<compile_context>
chip_gen: v6e
topology: v6e:2x2x1
jax: 0.10.0
libtpu: 0.0.40
codegen_flags: <defaults>
</compile_context>

<pallas_src>
import math
import functools

import jax
import jax.numpy as jnp
from jax.experimental import pallas as pl
from jax.experimental.pallas import tpu as pltpu

_LOG_2PI = math.log(2.0 * math.pi)


def _cdiv(a, b):
    return -(-a // b)


def _gmm_kernel(params_ref, xy_ref, out_ref, *, n_components):
    # params_ref: SMEM (K, 8) f32 rows:
    #   [mean_x, mean_y, 0.5*exp(-lvx), 0.5*exp(-lvy), const_k, 0, 0, 0]
    #   const_k = -log(2*pi) - lvx_k - lvy_k + log_pk[k]   (precomputed)
    # xy_ref:  (2, TR, TC) VMEM slab; x = xy_ref[0], y = xy_ref[1]
    # out_ref: (TR, TC)    VMEM slab, TR % 8 == 0, TC % 128 == 0 (unmasked vst)
    x = xy_ref[0]
    y = xy_ref[1]

    def comp_log(k):
        mx = params_ref[k, 0]
        my = params_ref[k, 1]
        ivx_h = params_ref[k, 2]   # 0.5 / var_x  (0.5 folded in)
        ivy_h = params_ref[k, 3]   # 0.5 / var_y
        ck = params_ref[k, 4]
        dx = x - mx
        dy = y - my
        return ck - (dx * dx * ivx_h + dy * dy * ivy_h)

    # Two-pass logsumexp over the tiny static component axis (unrolled):
    #   pass 1: K-1 jnp.maximum -> m        (VALU only, no serial EUP chain)
    #   pass 2: K exps + 1 log               (EUP: K+1 transcendentals/element)
    logs = [comp_log(k) for k in range(n_components)]
    m = logs[0]
    for k in range(1, n_components):
        m = jnp.maximum(m, logs[k])
    s = jnp.exp(logs[0] - m)
    for k in range(1, n_components):
        s = s + jnp.exp(logs[k] - m)
    out_ref[...] = m + jnp.log(s)


@functools.partial(jax.jit, static_argnames=("block_rows", "lane_cols"))
def gmm_log_likelihood(X, weights, means, log_variances, *,
                       block_rows=512, lane_cols=1024):
    """X: (N, 2) float32 -> (N,) log-likelihood, matching GMM.forward."""
    X = X.astype(jnp.float32)
    N = X.shape[0]
    K = weights.shape[0]

    # ---- hoist all per-component constants out of the grid loop -------------
    log_pk = jax.nn.log_softmax(weights.astype(jnp.float32))     # (K,)
    lvx = log_variances[:, 0].astype(jnp.float32)
    lvy = log_variances[:, 1].astype(jnp.float32)
    const_k = (-_LOG_2PI) - lvx - lvy + log_pk                   # (K,)

    params = jnp.zeros((K, 8), jnp.float32)
    params = params.at[:, 0].set(means[:, 0].astype(jnp.float32))
    params = params.at[:, 1].set(means[:, 1].astype(jnp.float32))
    params = params.at[:, 2].set(0.5 * jnp.exp(-lvx))            # 0.5 folded in
    params = params.at[:, 3].set(0.5 * jnp.exp(-lvy))
    params = params.at[:, 4].set(const_k)

    # ---- lane+sublane-dense slab layout --------------------------------------
    rows_needed = max(1, _cdiv(N, lane_cols))
    rows8 = _cdiv(rows_needed, 8) * 8
    br = max(8, min(block_rows, rows8) // 8 * 8)
    if rows8 >= 16 and _cdiv(rows8, br) < 2:
        # split into >= 2 steps so the parallel axis can shard across 2 TCs (v7x)
        br = min(br, _cdiv(_cdiv(rows8, 2), 8) * 8)
    steps = _cdiv(rows8, br)
    if steps > 1 and steps % 2 == 1:
        steps += 1                               # even step count -> 2-TC balance
    R = steps * br
    n_pad = R * lane_cols

    # One transpose + pad (no per-column scatters) into a fused (2, R, C) slab.
    # TODO(synk): ideally the producer emits X already in (2, N)/slab layout so
    # this re-materialization (and the final slice) disappear entirely.
    xy = jnp.pad(X.T, ((0, 0), (0, n_pad - N))).reshape(2, R, lane_cols)

    # Double-buffered per-step VMEM: xy block (2,br,C) + out block (br,C), f32.
    vmem_bytes = 2 * 3 * br * lane_cols * 4
    vmem_limit = min(max(vmem_bytes + (4 << 20), 16 << 20), 48 << 20)

    out = pl.pallas_call(
        functools.partial(_gmm_kernel, n_components=K),
        out_shape=jax.ShapeDtypeStruct((R, lane_cols), jnp.float32),
        grid_spec=pltpu.PrefetchScalarGridSpec(
            num_scalar_prefetch=1,                 # params -> SMEM, once
            grid=(steps,),
            in_specs=[
                pl.BlockSpec((2, br, lane_cols), lambda i, params: (0, i, 0)),
            ],
            out_specs=pl.BlockSpec((br, lane_cols), lambda i, params: (i, 0)),
        ),
        compiler_params=pltpu.CompilerParams(
            dimension_semantics=("parallel",),
            vmem_limit_bytes=vmem_limit,
        ),
    )(params, xy)

    return out.reshape(-1)[:N]


def _reference(X, weights, means, log_variances):
    """Pure-JAX reference mirroring the PyTorch forward."""
    log_pk = jax.nn.log_softmax(weights)                     # (K,)
    dx = X[:, 0][:, None] - means[:, 0][None, :]             # (N, K)
    dy = X[:, 1][:, None] - means[:, 1][None, :]
    lvx = log_variances[:, 0][None, :]
    lvy = log_variances[:, 1][None, :]
    logs = (-_LOG_2PI - lvx - lvy
            - 0.5 * (dx * dx / jnp.exp(lvx) + dy * dy / jnp.exp(lvy))
            + log_pk[None, :])                               # (N, K)
    return jax.scipy.special.logsumexp(logs, axis=1)


if __name__ == "__main__":
    key = jax.random.PRNGKey(0)
    k_x, k_w, k_m, k_x2 = jax.random.split(key, 4)

    n_components = 4
    n_samples = 64

    # Deterministic "parameters" (mirrors torch.randn / torch.zeros init shapes).
    weights = jax.random.normal(k_w, (n_components,), dtype=jnp.float32)
    means = jax.random.normal(k_m, (n_components, 2), dtype=jnp.float32)
    log_variances = jnp.zeros((n_components, 2), dtype=jnp.float32)

    # Small forward pass (single grid step).
    X = jax.random.normal(k_x, (n_samples, 2), dtype=jnp.float32)
    out = gmm_log_likelihood(X, weights, means, log_variances)
    out = jax.block_until_ready(out)
    ref = _reference(X, weights, means, log_variances)
    assert out.shape == (n_samples,)
    assert jnp.allclose(out, ref, atol=1e-4, rtol=1e-4), "mismatch vs reference (small)"

    # Multi-step pipeline check (small block params -> several grid iterations,
    # exercises even-step padding, fused xy slab, and tail handling).
    n2 = 5000
    X2 = jax.random.normal(k_x2, (n2, 2), dtype=jnp.float32)
    out2 = gmm_log_likelihood(X2, weights, means, log_variances,
                              block_rows=8, lane_cols=128)
    out2 = jax.block_until_ready(out2)
    ref2 = _reference(X2, weights, means, log_variances)
    assert out2.shape == (n2,)
    assert jnp.allclose(out2, ref2, atol=1e-4, rtol=1e-4), "mismatch vs reference (multi-step)"

    print("KERNEL_OK")
</pallas_src>

<mosaic_0001>
module attributes {stable_mosaic.version = 11 : i64} {
  func.func @_gmm_kernel(%arg0: i32, %arg1: memref<4x8xf32, #tpu.memory_space<smem>>, %arg2: memref<2x8x1024xf32, #tpu.memory_space<vmem>>, %arg3: memref<8x1024xf32, #tpu.memory_space<vmem>>) attributes {dimension_semantics = [#tpu.dimension_semantics<parallel>], iteration_bounds = array<i64: 1>, scalar_prefetch = 1 : i64, scratch_operands = 0 : i64, tpu.core_type = #tpu.core_type<tc>, window_params = [{transform_indices = @transform_0, window_bounds = array<i64: 2, 8, 1024>}, {transform_indices = @transform_1, window_bounds = array<i64: 8, 1024>}]} {
    %c0 = arith.constant 0 : index
    %c0_0 = arith.constant 0 : index
    %c0_1 = arith.constant 0 : index
    %0 = vector.load %arg2[%c0, %c0_0, %c0_1] : memref<2x8x1024xf32, #tpu.memory_space<vmem>>, vector<1x8x1024xf32>
    %1 = vector.shape_cast %0 : vector<1x8x1024xf32> to vector<8x1024xf32>
    %c1 = arith.constant 1 : index
    %c0_2 = arith.constant 0 : index
    %c0_3 = arith.constant 0 : index
    %2 = vector.load %arg2[%c1, %c0_2, %c0_3] : memref<2x8x1024xf32, #tpu.memory_space<vmem>>, vector<1x8x1024xf32>
    %3 = vector.shape_cast %2 : vector<1x8x1024xf32> to vector<8x1024xf32>
    %c0_4 = arith.constant 0 : index
    %c0_5 = arith.constant 0 : index
    %4 = memref.load %arg1[%c0_4, %c0_5] : memref<4x8xf32, #tpu.memory_space<smem>>
    %c0_6 = arith.constant 0 : index
    %c1_7 = arith.constant 1 : index
    %5 = memref.load %arg1[%c0_6, %c1_7] : memref<4x8xf32, #tpu.memory_space<smem>>
    %c0_8 = arith.constant 0 : index
    %c2 = arith.constant 2 : index
    %6 = memref.load %arg1[%c0_8, %c2] : memref<4x8xf32, #tpu.memory_space<smem>>
    %c0_9 = arith.constant 0 : index
    %c3 = arith.constant 3 : index
    %7 = memref.load %arg1[%c0_9, %c3] : memref<4x8xf32, #tpu.memory_space<smem>>
    %c0_10 = arith.constant 0 : index
    %c4 = arith.constant 4 : index
    %8 = memref.load %arg1[%c0_10, %c4] : memref<4x8xf32, #tpu.memory_space<smem>>
    %9 = vector.broadcast %4 : f32 to vector<8x1024xf32>
    %10 = arith.subf %1, %9 : vector<8x1024xf32>
    %11 = vector.broadcast %5 : f32 to vector<8x1024xf32>
    %12 = arith.subf %3, %11 : vector<8x1024xf32>
    %13 = arith.mulf %10, %10 : vector<8x1024xf32>
    %14 = vector.broadcast %6 : f32 to vector<8x1024xf32>
    %15 = arith.mulf %13, %14 : vector<8x1024xf32>
    %16 = arith.mulf %12, %12 : vector<8x1024xf32>
    %17 = vector.broadcast %7 : f32 to vector<8x1024xf32>
    %18 = arith.mulf %16, %17 : vector<8x1024xf32>
    %19 = arith.addf %15, %18 : vector<8x1024xf32>
    %20 = vector.broadcast %8 : f32 to vector<8x1024xf32>
    %21 = arith.subf %20, %19 : vector<8x1024xf32>
    %c1_11 = arith.constant 1 : index
    %c0_12 = arith.constant 0 : index
    %22 = memref.load %arg1[%c1_11, %c0_12] : memref<4x8xf32, #tpu.memory_space<smem>>
    %c1_13 = arith.constant 1 : index
    %c1_14 = arith.constant 1 : index
    %23 = memref.load %arg1[%c1_13, %c1_14] : memref<4x8xf32, #tpu.memory_space<smem>>
    %c1_15 = arith.constant 1 : index
    %c2_16 = arith.constant 2 : index
    %24 = memref.load %arg1[%c1_15, %c2_16] : memref<4x8xf32, #tpu.memory_space<smem>>
    %c1_17 = arith.constant 1 : index
    %c3_18 = arith.constant 3 : index
    %25 = memref.load %arg1[%c1_17, %c3_18] : memref<4x8xf32, #tpu.memory_space<smem>>
    %c1_19 = arith.constant 1 : index
    %c4_20 = arith.constant 4 : index
    %26 = memref.load %arg1[%c1_19, %c4_20] : memref<4x8xf32, #tpu.memory_space<smem>>
    %27 = vector.broadcast %22 : f32 to vector<8x1024xf32>
    %28 = arith.subf %1, %27 : vector<8x1024xf32>
    %29 = vector.broadcast %23 : f32 to vector<8x1024xf32>
    %30 = arith.subf %3, %29 : vector<8x1024xf32>
    %31 = arith.mulf %28, %28 : vector<8x1024xf32>
    %32 = vector.broadcast %24 : f32 to vector<8x1024xf32>
    %33 = arith.mulf %31, %32 : vector<8x1024xf32>
    %34 = arith.mulf %30, %30 : vector<8x1024xf32>
    %35 = vector.broadcast %25 : f32 to vector<8x1024xf32>
    %36 = arith.mulf %34, %35 : vector<8x1024xf32>
    %37 = arith.addf %33, %36 : vector<8x1024xf32>
    %38 = vector.broadcast %26 : f32 to vector<8x1024xf32>
    %39 = arith.subf %38, %37 : vector<8x1024xf32>
    %c2_21 = arith.constant 2 : index
    %c0_22 = arith.constant 0 : index
    %40 = memref.load %arg1[%c2_21, %c0_22] : memref<4x8xf32, #tpu.memory_space<smem>>
    %c2_23 = arith.constant 2 : index
    %c1_24 = arith.constant 1 : index
    %41 = memref.load %arg1[%c2_23, %c1_24] : memref<4x8xf32, #tpu.memory_space<smem>>
    %c2_25 = arith.constant 2 : index
    %c2_26 = arith.constant 2 : index
    %42 = memref.load %arg1[%c2_25, %c2_26] : memref<4x8xf32, #tpu.memory_space<smem>>
    %c2_27 = arith.constant 2 : index
    %c3_28 = arith.constant 3 : index
    %43 = memref.load %arg1[%c2_27, %c3_28] : memref<4x8xf32, #tpu.memory_space<smem>>
    %c2_29 = arith.constant 2 : index
    %c4_30 = arith.constant 4 : index
    %44 = memref.load %arg1[%c2_29, %c4_30] : memref<4x8xf32, #tpu.memory_space<smem>>
    %45 = vector.broadcast %40 : f32 to vector<8x1024xf32>
    %46 = arith.subf %1, %45 : vector<8x1024xf32>
    %47 = vector.broadcast %41 : f32 to vector<8x1024xf32>
    %48 = arith.subf %3, %47 : vector<8x1024xf32>
    %49 = arith.mulf %46, %46 : vector<8x1024xf32>
    %50 = vector.broadcast %42 : f32 to vector<8x1024xf32>
    %51 = arith.mulf %49, %50 : vector<8x1024xf32>
    %52 = arith.mulf %48, %48 : vector<8x1024xf32>
    %53 = vector.broadcast %43 : f32 to vector<8x1024xf32>
    %54 = arith.mulf %52, %53 : vector<8x1024xf32>
    %55 = arith.addf %51, %54 : vector<8x1024xf32>
    %56 = vector.broadcast %44 : f32 to vector<8x1024xf32>
    %57 = arith.subf %56, %55 : vector<8x1024xf32>
    %c3_31 = arith.constant 3 : index
    %c0_32 = arith.constant 0 : index
    %58 = memref.load %arg1[%c3_31, %c0_32] : memref<4x8xf32, #tpu.memory_space<smem>>
    %c3_33 = arith.constant 3 : index
    %c1_34 = arith.constant 1 : index
    %59 = memref.load %arg1[%c3_33, %c1_34] : memref<4x8xf32, #tpu.memory_space<smem>>
    %c3_35 = arith.constant 3 : index
    %c2_36 = arith.constant 2 : index
    %60 = memref.load %arg1[%c3_35, %c2_36] : memref<4x8xf32, #tpu.memory_space<smem>>
    %c3_37 = arith.constant 3 : index
    %c3_38 = arith.constant 3 : index
    %61 = memref.load %arg1[%c3_37, %c3_38] : memref<4x8xf32, #tpu.memory_space<smem>>
    %c3_39 = arith.constant 3 : index
    %c4_40 = arith.constant 4 : index
    %62 = memref.load %arg1[%c3_39, %c4_40] : memref<4x8xf32, #tpu.memory_space<smem>>
    %63 = vector.broadcast %58 : f32 to vector<8x1024xf32>
    %64 = arith.subf %1, %63 : vector<8x1024xf32>
    %65 = vector.broadcast %59 : f32 to vector<8x1024xf32>
    %66 = arith.subf %3, %65 : vector<8x1024xf32>
    %67 = arith.mulf %64, %64 : vector<8x1024xf32>
    %68 = vector.broadcast %60 : f32 to vector<8x1024xf32>
    %69 = arith.mulf %67, %68 : vector<8x1024xf32>
    %70 = arith.mulf %66, %66 : vector<8x1024xf32>
    %71 = vector.broadcast %61 : f32 to vector<8x1024xf32>
    %72 = arith.mulf %70, %71 : vector<8x1024xf32>
    %73 = arith.addf %69, %72 : vector<8x1024xf32>
    %74 = vector.broadcast %62 : f32 to vector<8x1024xf32>
    %75 = arith.subf %74, %73 : vector<8x1024xf32>
    %76 = arith.maximumf %21, %39 : vector<8x1024xf32>
    %77 = arith.maximumf %76, %57 : vector<8x1024xf32>
    %78 = arith.maximumf %77, %75 : vector<8x1024xf32>
    %79 = arith.subf %21, %78 : vector<8x1024xf32>
    %80 = math.exp %79 : vector<8x1024xf32>
    %81 = arith.subf %39, %78 : vector<8x1024xf32>
    %82 = math.exp %81 : vector<8x1024xf32>
    %83 = arith.addf %80, %82 : vector<8x1024xf32>
    %84 = arith.subf %57, %78 : vector<8x1024xf32>
    %85 = math.exp %84 : vector<8x1024xf32>
    %86 = arith.addf %83, %85 : vector<8x1024xf32>
    %87 = arith.subf %75, %78 : vector<8x1024xf32>
    %88 = math.exp %87 : vector<8x1024xf32>
    %89 = arith.addf %86, %88 : vector<8x1024xf32>
    %90 = math.log %89 : vector<8x1024xf32>
    %91 = arith.addf %78, %90 : vector<8x1024xf32>
    %c0_41 = arith.constant 0 : index
    %c0_42 = arith.constant 0 : index
    %92 = vector.load %arg3[%c0_41, %c0_42] : memref<8x1024xf32, #tpu.memory_space<vmem>>, vector<8x1024xf32>
    tpu.vector_store %arg3[%c0_41, %c0_42], %91 {strides = array<i32>} : memref<8x1024xf32, #tpu.memory_space<vmem>>, vector<8x1024xf32>,
    return
  }
  func.func @transform_0(%arg0: i32, %arg1: memref<4x8xf32, #tpu.memory_space<smem>>) -> (i32, i32, i32) {
    %c0_i32 = arith.constant 0 : i32
    %c0_i32_0 = arith.constant 0 : i32
    %c0_i32_1 = arith.constant 0 : i32
    return %c0_i32, %arg0, %c0_i32_0 : i32, i32, i32
  }
  func.func @transform_1(%arg0: i32, %arg1: memref<4x8xf32, #tpu.memory_space<smem>>) -> (i32, i32) {
    %c0_i32 = arith.constant 0 : i32
    %c0_i32_0 = arith.constant 0 : i32
    return %arg0, %c0_i32 : i32, i32
  }
}

</mosaic_0001>

<llo_original>
// kernel: gmm_log_likelihood.1
$region0: #{gmm_log_likelihood.1}
  #allocation0 [shape = 'u32[]', space=smem, size = 0x4, offset = 0x4, fixed_abs, tag = 'smem constant byte address 0x4 - core index']
  #allocation1 [shape = 'u32[144,128]{1,0:T(1,128)}', space=vmem, size = 0x12000, scoped, tag = 'internal scratch']
  #allocation2 [shape = 's32[1]{0}', space=sflag, size = 0x4, scoped, tag = 'scoped memory for gmm_log_likelihood.1']
  #allocation3 [shape = 'u8[2048]{0}', space=smem, size = 0x800, scoped, tag = 'prefetched SMEM operand 0']
  %s0 = inlined_call_operand.vmem [shape: f32[4,8], index: 0, kind: input, shape index: {}]
  %s1 = inlined_call_operand.vmem [shape: f32[2,8,1024], index: 1, kind: input, shape index: {}]
  %s2 = inlined_call_operand.vmem [shape: f32[8,1024], index: 2, kind: output, shape index: {}]
  %s3 = sld [smem:[#allocation0]]
  $region14: #{gmm_log_likelihood.1} parent=0
    _
  %s5 = ssub.s32 1, %s3
  %s6 = scalar_select 0, %s5, %s3
  %s7 = sshll.u32 %s0, 4
  %s8 = int_to_ptr.vmem [resolvable:$true] %s7
  %10 = dma.vmem_to_smem %s8, 64, [#allocation3], [#allocation2]
  %11 = dma.done [#allocation2], 64
  %12 = sfence
  // Predicated region
  $region2: #{gmm_log_likelihood.1} parent=0 // pred_check
    _
  $region3: #{gmm_log_likelihood.1} parent=0 // pred_check_branch
    %14 = sbr.rel (0) target = $region5
  $region4: #{gmm_log_likelihood.1} parent=0 // pred_region
    _
  $region5: #{gmm_log_likelihood.1} parent=0 // pred_fallthru
    _
  %v15 = vld [vmem:[%s1] sm:$0xff]
  %v16 = vld [vmem:[%s1 + $0x8] sm:$0xff]
  %v17 = vld [vmem:[%s1 + $0x10] sm:$0xff]
  %v18 = vld [vmem:[%s1 + $0x18] sm:$0xff]
  %v19 = vld [vmem:[%s1 + $0x20] sm:$0xff]
  %v20 = vld [vmem:[%s1 + $0x28] sm:$0xff]
  %v21 = vld [vmem:[%s1 + $0x30] sm:$0xff]
  %v22 = vld [vmem:[%s1 + $0x38] sm:$0xff]
  %s23 = scalar_lea.vmem %s1, 64
  %v24 = vld [vmem:[%s23] sm:$0xff]
  %v25 = vld [vmem:[%s23 + $0x8] sm:$0xff]
  %v26 = vld [vmem:[%s23 + $0x10] sm:$0xff]
  %v27 = vld [vmem:[%s23 + $0x18] sm:$0xff]
  %v28 = vld [vmem:[%s23 + $0x20] sm:$0xff]
  %v29 = vld [vmem:[%s23 + $0x28] sm:$0xff]
  %v30 = vld [vmem:[%s23 + $0x30] sm:$0xff]
  %v31 = vld [vmem:[%s23 + $0x38] sm:$0xff]
  %s32 = sld [smem:[#allocation3]]
  %s33 = sld [smem:[#allocation3 + $0x1]]
  %s34 = sld [smem:[#allocation3 + $0x2]]
  %s35 = sld [smem:[#allocation3 + $0x3]]
  %s36 = sld [smem:[#allocation3 + $0x4]]
  %v37 = vstv %s32
  %v38 = vsub.f32 %v15, %v37
  %v39 = vsub.f32 %v16, %v37
  %v40 = vsub.f32 %v17, %v37
  %v41 = vsub.f32 %v18, %v37
  %v42 = vsub.f32 %v19, %v37
  %v43 = vsub.f32 %v20, %v37
  %v44 = vsub.f32 %v21, %v37
  %v45 = vsub.f32 %v22, %v37
  %v46 = vstv %s33
  %v47 = vsub.f32 %v24, %v46
  %v48 = vsub.f32 %v25, %v46
  %v49 = vsub.f32 %v26, %v46
  %v50 = vsub.f32 %v27, %v46
  %v51 = vsub.f32 %v28, %v46
  %v52 = vsub.f32 %v29, %v46
  %v53 = vsub.f32 %v30, %v46
  %v54 = vsub.f32 %v31, %v46
  %v55 = vmul.f32 %v38, %v38
  %v56 = vmul.f32 %v39, %v39
  %v57 = vmul.f32 %v40, %v40
  %v58 = vmul.f32 %v41, %v41
  %v59 = vmul.f32 %v42, %v42
  %v60 = vmul.f32 %v43, %v43
  %v61 = vmul.f32 %v44, %v44
  %v62 = vmul.f32 %v45, %v45
  %v63 = vstv %s34
  %v64 = vmul.f32 %v55, %v63
  %v65 = vmul.f32 %v56, %v63
  %v66 = vmul.f32 %v57, %v63
  %v67 = vmul.f32 %v58, %v63
  %v68 = vmul.f32 %v59, %v63
  %v69 = vmul.f32 %v60, %v63
  %v70 = vmul.f32 %v61, %v63
  %v71 = vmul.f32 %v62, %v63
  %v72 = vmul.f32 %v47, %v47
  %v73 = vmul.f32 %v48, %v48
  %v74 = vmul.f32 %v49, %v49
  %v75 = vmul.f32 %v50, %v50
  %v76 = vmul.f32 %v51, %v51
  %v77 = vmul.f32 %v52, %v52
  %v78 = vmul.f32 %v53, %v53
  %v79 = vmul.f32 %v54, %v54
  %v80 = vstv %s35
  %v81 = vmul.f32 %v72, %v80
  %v82 = vmul.f32 %v73, %v80
  %v83 = vmul.f32 %v74, %v80
  %v84 = vmul.f32 %v75, %v80
  %v85 = vmul.f32 %v76, %v80
  %v86 = vmul.f32 %v77, %v80
  %v87 = vmul.f32 %v78, %v80
  %v88 = vmul.f32 %v79, %v80
  %v89 = vadd.f32 %v64, %v81
  %v90 = vadd.f32 %v65, %v82
  %v91 = vadd.f32 %v66, %v83
  %v92 = vadd.f32 %v67, %v84
  %v93 = vadd.f32 %v68, %v85
  %v94 = vadd.f32 %v69, %v86
  %v95 = vadd.f32 %v70, %v87
  %v96 = vadd.f32 %v71, %v88
  %v97 = vstv %s36
  %v98 = vsub.f32 %v97, %v89
  %v99 = vsub.f32 %v97, %v90
  %v100 = vsub.f32 %v97, %v91
  %v101 = vsub.f32 %v97, %v92
  %v102 = vsub.f32 %v97, %v93
  %v103 = vsub.f32 %v97, %v94
  %v104 = vsub.f32 %v97, %v95
  %v105 = vsub.f32 %v97, %v96
  %s106 = sld [smem:[#allocation3 + $0x80]]
  %s107 = sld [smem:[#allocation3 + $0x81]]
  %s108 = sld [smem:[#allocation3 + $0x82]]
  %s109 = sld [smem:[#allocation3 + $0x83]]
  %s110 = sld [smem:[#allocation3 + $0x84]]
  %v111 = vstv %s106
  %v112 = vsub.f32 %v15, %v111
  %v113 = vsub.f32 %v16, %v111
  %v114 = vsub.f32 %v17, %v111
  %v115 = vsub.f32 %v18, %v111
  %v116 = vsub.f32 %v19, %v111
  %v117 = vsub.f32 %v20, %v111
  %v118 = vsub.f32 %v21, %v111
  %v119 = vsub.f32 %v22, %v111
  %v120 = vstv %s107
  %v121 = vsub.f32 %v24, %v120
  %v122 = vsub.f32 %v25, %v120
  %v123 = vsub.f32 %v26, %v120
  %v124 = vsub.f32 %v27, %v120
  %v125 = vsub.f32 %v28, %v120
  %v126 = vsub.f32 %v29, %v120
  %v127 = vsub.f32 %v30, %v120
  %v128 = vsub.f32 %v31, %v120
  %v129 = vmul.f32 %v112, %v112
  %v130 = vmul.f32 %v113, %v113
  %v131 = vmul.f32 %v114, %v114
  %v132 = vmul.f32 %v115, %v115
  %v133 = vmul.f32 %v116, %v116
  %v134 = vmul.f32 %v117, %v117
  %v135 = vmul.f32 %v118, %v118
  %v136 = vmul.f32 %v119, %v119
  %v137 = vstv %s108
  %v138 = vmul.f32 %v129, %v137
  %v139 = vmul.f32 %v130, %v137
  %v140 = vmul.f32 %v131, %v137
  %v141 = vmul.f32 %v132, %v137
  %v142 = vmul.f32 %v133, %v137
  %v143 = vmul.f32 %v134, %v137
  %v144 = vmul.f32 %v135, %v137
  %v145 = vmul.f32 %v136, %v137
  %v146 = vmul.f32 %v121, %v121
  %v147 = vmul.f32 %v122, %v122
  %v148 = vmul.f32 %v123, %v123
  %v149 = vmul.f32 %v124, %v124
  %v150 = vmul.f32 %v125, %v125
  %v151 = vmul.f32 %v126, %v126
  %v152 = vmul.f32 %v127, %v127
  %v153 = vmul.f32 %v128, %v128
  %v154 = vstv %s109
  %v155 = vmul.f32 %v146, %v154
  %v156 = vmul.f32 %v147, %v154
  %v157 = vmul.f32 %v148, %v154
  %v158 = vmul.f32 %v149, %v154
  %v159 = vmul.f32 %v150, %v154
  %v160 = vmul.f32 %v151, %v154
  %v161 = vmul.f32 %v152, %v154
  %v162 = vmul.f32 %v153, %v154
  %v163 = vadd.f32 %v138, %v155
  %v164 = vadd.f32 %v139, %v156
  %v165 = vadd.f32 %v140, %v157
  %v166 = vadd.f32 %v141, %v158
  %v167 = vadd.f32 %v142, %v159
  %v168 = vadd.f32 %v143, %v160
  %v169 = vadd.f32 %v144, %v161
  %v170 = vadd.f32 %v145, %v162
  %v171 = vstv %s110
  %v172 = vsub.f32 %v171, %v163
  %v173 = vsub.f32 %v171, %v164
  %v174 = vsub.f32 %v171, %v165
  %v175 = vsub.f32 %v171, %v166
  %v176 = vsub.f32 %v171, %v167
  %v177 = vsub.f32 %v171, %v168
  %v178 = vsub.f32 %v171, %v169
  %v179 = vsub.f32 %v171, %v170
  %s180 = sld [smem:[#allocation3 + $0x100]]
  %s181 = sld [smem:[#allocation3 + $0x101]]
  %s182 = sld [smem:[#allocation3 + $0x102]]
  %s183 = sld [smem:[#allocation3 + $0x103]]
  %s184 = sld [smem:[#allocation3 + $0x104]]
  %v185 = vstv %s180
  %v186 = vsub.f32 %v15, %v185
  %v187 = vsub.f32 %v16, %v185
  %v188 = vsub.f32 %v17, %v185
  %v189 = vsub.f32 %v18, %v185
  %v190 = vsub.f32 %v19, %v185
  %v191 = vsub.f32 %v20, %v185
  %v192 = vsub.f32 %v21, %v185
  %v193 = vsub.f32 %v22, %v185
  %v194 = vstv %s181
  %v195 = vsub.f32 %v24, %v194
  %v196 = vsub.f32 %v25, %v194
  %v197 = vsub.f32 %v26, %v194
  %v198 = vsub.f32 %v27, %v194
  %v199 = vsub.f32 %v28, %v194
  %v200 = vsub.f32 %v29, %v194
  %v201 = vsub.f32 %v30, %v194
  %v202 = vsub.f32 %v31, %v194
  %v203 = vmul.f32 %v186, %v186
  %v204 = vmul.f32 %v187, %v187
  %v205 = vmul.f32 %v188, %v188
  %v206 = vmul.f32 %v189, %v189
  %v207 = vmul.f32 %v190, %v190
  %v208 = vmul.f32 %v191, %v191
  %v209 = vmul.f32 %v192, %v192
  %v210 = vmul.f32 %v193, %v193
  %v211 = vstv %s182
  %v212 = vmul.f32 %v203, %v211
  %v213 = vmul.f32 %v204, %v211
  %v214 = vmul.f32 %v205, %v211
  %v215 = vmul.f32 %v206, %v211
  %v216 = vmul.f32 %v207, %v211
  %v217 = vmul.f32 %v208, %v211
  %v218 = vmul.f32 %v209, %v211
  %v219 = vmul.f32 %v210, %v211
  %v220 = vmul.f32 %v195, %v195
  %v221 = vmul.f32 %v196, %v196
  %v222 = vmul.f32 %v197, %v197
  %v223 = vmul.f32 %v198, %v198
  %v224 = vmul.f32 %v199, %v199
  %v225 = vmul.f32 %v200, %v200
  %v226 = vmul.f32 %v201, %v201
  %v227 = vmul.f32 %v202, %v202
  %v228 = vstv %s183
  %v229 = vmul.f32 %v220, %v228
  %v230 = vmul.f32 %v221, %v228
  %v231 = vmul.f32 %v222, %v228
  %v232 = vmul.f32 %v223, %v228
  %v233 = vmul.f32 %v224, %v228
  %v234 = vmul.f32 %v225, %v228
  %v235 = vmul.f32 %v226, %v228
  %v236 = vmul.f32 %v227, %v228
  %v237 = vadd.f32 %v212, %v229
  %v238 = vadd.f32 %v213, %v230
  %v239 = vadd.f32 %v214, %v231
  %v240 = vadd.f32 %v215, %v232
  %v241 = vadd.f32 %v216, %v233
  %v242 = vadd.f32 %v217, %v234
  %v243 = vadd.f32 %v218, %v235
  %v244 = vadd.f32 %v219, %v236
  %v245 = vstv %s184
  %v246 = vsub.f32 %v245, %v237
  %v247 = vsub.f32 %v245, %v238
  %v248 = vsub.f32 %v245, %v239
  %v249 = vsub.f32 %v245, %v240
  %v250 = vsub.f32 %v245, %v241
  %v251 = vsub.f32 %v245, %v242
  %v252 = vsub.f32 %v245, %v243
  %v253 = vsub.f32 %v245, %v244
  %s254 = sld [smem:[#allocation3 + $0x180]]
  %s255 = sld [smem:[#allocation3 + $0x181]]
  %s256 = sld [smem:[#allocation3 + $0x182]]
  %s257 = sld [smem:[#allocation3 + $0x183]]
  %s258 = sld [smem:[#allocation3 + $0x184]]
  %v259 = vstv %s254
  %v260 = vsub.f32 %v15, %v259
  %v261 = vsub.f32 %v16, %v259
  %v262 = vsub.f32 %v17, %v259
  %v263 = vsub.f32 %v18, %v259
  %v264 = vsub.f32 %v19, %v259
  %v265 = vsub.f32 %v20, %v259
  %v266 = vsub.f32 %v21, %v259
  %v267 = vsub.f32 %v22, %v259
  %v268 = vstv %s255
  %v269 = vsub.f32 %v24, %v268
  %v270 = vsub.f32 %v25, %v268
  %v271 = vsub.f32 %v26, %v268
  %v272 = vsub.f32 %v27, %v268
  %v273 = vsub.f32 %v28, %v268
  %v274 = vsub.f32 %v29, %v268
  %v275 = vsub.f32 %v30, %v268
  %v276 = vsub.f32 %v31, %v268
  %v277 = vmul.f32 %v260, %v260
  %v278 = vmul.f32 %v261, %v261
  %v279 = vmul.f32 %v262, %v262
  %v280 = vmul.f32 %v263, %v263
  %v281 = vmul.f32 %v264, %v264
  %v282 = vmul.f32 %v265, %v265
  %v283 = vmul.f32 %v266, %v266
  %v284 = vmul.f32 %v267, %v267
  %v285 = vstv %s256
  %v286 = vmul.f32 %v277, %v285
  %v287 = vmul.f32 %v278, %v285
  %v288 = vmul.f32 %v279, %v285
  %v289 = vmul.f32 %v280, %v285
  %v290 = vmul.f32 %v281, %v285
  %v291 = vmul.f32 %v282, %v285
  %v292 = vmul.f32 %v283, %v285
  %v293 = vmul.f32 %v284, %v285
  %v294 = vmul.f32 %v269, %v269
  %v295 = vmul.f32 %v270, %v270
  %v296 = vmul.f32 %v271, %v271
  %v297 = vmul.f32 %v272, %v272
  %v298 = vmul.f32 %v273, %v273
  %v299 = vmul.f32 %v274, %v274
  %v300 = vmul.f32 %v275, %v275
  %v301 = vmul.f32 %v276, %v276
  %v302 = vstv %s257
  %v303 = vmul.f32 %v294, %v302
  %v304 = vmul.f32 %v295, %v302
  %v305 = vmul.f32 %v296, %v302
  %v306 = vmul.f32 %v297, %v302
  %v307 = vmul.f32 %v298, %v302
  %v308 = vmul.f32 %v299, %v302
  %v309 = vmul.f32 %v300, %v302
  %v310 = vmul.f32 %v301, %v302
  %v311 = vadd.f32 %v286, %v303
  %v312 = vadd.f32 %v287, %v304
  %v313 = vadd.f32 %v288, %v305
  %v314 = vadd.f32 %v289, %v306
  %v315 = vadd.f32 %v290, %v307
  %v316 = vadd.f32 %v291, %v308
  %v317 = vadd.f32 %v292, %v309
  %v318 = vadd.f32 %v293, %v310
  %v319 = vstv %s258
  %v320 = vsub.f32 %v319, %v311
  %v321 = vsub.f32 %v319, %v312
  %v322 = vsub.f32 %v319, %v313
  %v323 = vsub.f32 %v319, %v314
  %v324 = vsub.f32 %v319, %v315
  %v325 = vsub.f32 %v319, %v316
  %v326 = vsub.f32 %v319, %v317
  %v327 = vsub.f32 %v319, %v318
  %v328 = vmax.f32 %v98, %v172
  %v329 = vmax.f32 %v99, %v173
  %v330 = vmax.f32 %v100, %v174
  %v331 = vmax.f32 %v101, %v175
  %v332 = vmax.f32 %v102, %v176
  %v333 = vmax.f32 %v103, %v177
  %v334 = vmax.f32 %v104, %v178
  %v335 = vmax.f32 %v105, %v179
  %v336 = vmax.f32 %v328, %v246
  %v337 = vmax.f32 %v329, %v247
  %v338 = vmax.f32 %v330, %v248
  %v339 = vmax.f32 %v331, %v249
  %v340 = vmax.f32 %v332, %v250
  %v341 = vmax.f32 %v333, %v251
  %v342 = vmax.f32 %v334, %v252
  %v343 = vmax.f32 %v335, %v253
  %v344 = vmax.f32 %v336, %v320
  %v345 = vmax.f32 %v337, %v321
  %v346 = vmax.f32 %v338, %v322
  %v347 = vmax.f32 %v339, %v323
  %v348 = vmax.f32 %v340, %v324
  %v349 = vmax.f32 %v341, %v325
  %v350 = vmax.f32 %v342, %v326
  %v351 = vmax.f32 %v343, %v327
  %v352 = vsub.f32 %v98, %v344
  %v353 = vsub.f32 %v99, %v345
  %v354 = vsub.f32 %v100, %v346
  %v355 = vsub.f32 %v101, %v347
  %v356 = vsub.f32 %v102, %v348
  %v357 = vsub.f32 %v103, %v349
  %v358 = vsub.f32 %v104, %v350
  %v359 = vsub.f32 %v105, %v351
  %v360 = vmul.f32 %v352, 1.442695
  %v361 = vpow.pop %v360
  %v362 = vmul.f32 %v353, 1.442695
  %v363 = vpow.pop %v362
  %v364 = vmul.f32 %v354, 1.442695
  %v365 = vpow.pop %v364
  %v366 = vmul.f32 %v355, 1.442695
  %v367 = vpow.pop %v366
  %v368 = vmul.f32 %v356, 1.442695
  %v369 = vpow.pop %v368
  %v370 = vmul.f32 %v357, 1.442695
  %v371 = vpow.pop %v370
  %v372 = vmul.f32 %v358, 1.442695
  %v373 = vpow.pop %v372
  %v374 = vmul.f32 %v359, 1.442695
  %v375 = vpow.pop %v374
  %v376 = vsub.f32 %v172, %v344
  %v377 = vsub.f32 %v173, %v345
  %v378 = vsub.f32 %v174, %v346
  %v379 = vsub.f32 %v175, %v347
  %v380 = vsub.f32 %v176, %v348
  %v381 = vsub.f32 %v177, %v349
  %v382 = vsub.f32 %v178, %v350
  %v383 = vsub.f32 %v179, %v351
  %v384 = vmul.f32 %v376, 1.442695
  %v385 = vpow.pop %v384
  %v386 = vmul.f32 %v377, 1.442695
  %v387 = vpow.pop %v386
  %v388 = vmul.f32 %v378, 1.442695
  %v389 = vpow.pop %v388
  %v390 = vmul.f32 %v379, 1.442695
  %v391 = vpow.pop %v390
  %v392 = vmul.f32 %v380, 1.442695
  %v393 = vpow.pop %v392
  %v394 = vmul.f32 %v381, 1.442695
  %v395 = vpow.pop %v394
  %v396 = vmul.f32 %v382, 1.442695
  %v397 = vpow.pop %v396
  %v398 = vmul.f32 %v383, 1.442695
  %v399 = vpow.pop %v398
  %v400 = vadd.f32 %v361, %v385
  %v401 = vadd.f32 %v363, %v387
  %v402 = vadd.f32 %v365, %v389
  %v403 = vadd.f32 %v367, %v391
  %v404 = vadd.f32 %v369, %v393
  %v405 = vadd.f32 %v371, %v395
  %v406 = vadd.f32 %v373, %v397
  %v407 = vadd.f32 %v375, %v399
  %v408 = vsub.f32 %v246, %v344
  %v409 = vsub.f32 %v247, %v345
  %v410 = vsub.f32 %v248, %v346
  %v411 = vsub.f32 %v249, %v347
  %v412 = vsub.f32 %v250, %v348
  %v413 = vsub.f32 %v251, %v349
  %v414 = vsub.f32 %v252, %v350
  %v415 = vsub.f32 %v253, %v351
  %v416 = vmul.f32 %v408, 1.442695
  %v417 = vpow.pop %v416
  %v418 = vmul.f32 %v409, 1.442695
  %v419 = vpow.pop %v418
  %v420 = vmul.f32 %v410, 1.442695
  %v421 = vpow.pop %v420
  %v422 = vmul.f32 %v411, 1.442695
  %v423 = vpow.pop %v422
  %v424 = vmul.f32 %v412, 1.442695
  %v425 = vpow.pop %v424
  %v426 = vmul.f32 %v413, 1.442695
  %v427 = vpow.pop %v426
  %v428 = vmul.f32 %v414, 1.442695
  %v429 = vpow.pop %v428
  %v430 = vmul.f32 %v415, 1.442695
  %v431 = vpow.pop %v430
  %v432 = vadd.f32 %v400, %v417
  %v433 = vadd.f32 %v401, %v419
  %v434 = vadd.f32 %v402, %v421
  %v435 = vadd.f32 %v403, %v423
  %v436 = vadd.f32 %v404, %v425
  %v437 = vadd.f32 %v405, %v427
  %v438 = vadd.f32 %v406, %v429
  %v439 = vadd.f32 %v407, %v431
  %v440 = vsub.f32 %v320, %v344
  %v441 = vsub.f32 %v321, %v345
  %v442 = vsub.f32 %v322, %v346
  %v443 = vsub.f32 %v323, %v347
  %v444 = vsub.f32 %v324, %v348
  %v445 = vsub.f32 %v325, %v349
  %v446 = vsub.f32 %v326, %v350
  %v447 = vsub.f32 %v327, %v351
  %v448 = vmul.f32 %v440, 1.442695
  %v449 = vpow.pop %v448
  %v450 = vmul.f32 %v441, 1.442695
  %v451 = vpow.pop %v450
  %v452 = vmul.f32 %v442, 1.442695
  %v453 = vpow.pop %v452
  %v454 = vmul.f32 %v443, 1.442695
  %v455 = vpow.pop %v454
  %v456 = vmul.f32 %v444, 1.442695
  %v457 = vpow.pop %v456
  %v458 = vmul.f32 %v445, 1.442695
  %v459 = vpow.pop %v458
  %v460 = vmul.f32 %v446, 1.442695
  %v461 = vpow.pop %v460
  %v462 = vmul.f32 %v447, 1.442695
  %v463 = vpow.pop %v462
  %v464 = vadd.f32 %v432, %v449
  %v465 = vadd.f32 %v433, %v451
  %v466 = vadd.f32 %v434, %v453
  %v467 = vadd.f32 %v435, %v455
  %v468 = vadd.f32 %v436, %v457
  %v469 = vadd.f32 %v437, %v459
  %v470 = vadd.f32 %v438, %v461
  %v471 = vadd.f32 %v439, %v463
  %v472 = vlog2.pop %v464
  %v473 = vmul.f32 %v472, 0.6931472
  %v474 = vlog2.pop %v465
  %v475 = vmul.f32 %v474, 0.6931472
  %v476 = vlog2.pop %v466
  %v477 = vmul.f32 %v476, 0.6931472
  %v478 = vlog2.pop %v467
  %v479 = vmul.f32 %v478, 0.6931472
  %v480 = vlog2.pop %v468
  %v481 = vmul.f32 %v480, 0.6931472
  %v482 = vlog2.pop %v469
  %v483 = vmul.f32 %v482, 0.6931472
  %v484 = vlog2.pop %v470
  %v485 = vmul.f32 %v484, 0.6931472
  %v486 = vlog2.pop %v471
  %v487 = vmul.f32 %v486, 0.6931472
  %v488 = vadd.f32 %v344, %v473
  %v489 = vadd.f32 %v345, %v475
  %v490 = vadd.f32 %v346, %v477
  %v491 = vadd.f32 %v347, %v479
  %v492 = vadd.f32 %v348, %v481
  %v493 = vadd.f32 %v349, %v483
  %v494 = vadd.f32 %v350, %v485
  %v495 = vadd.f32 %v351, %v487
  %496 = vst [vmem:[%s2] sm:$0xff] %v488
  %497 = vst [vmem:[%s2 + $0x8] sm:$0xff] %v489
  %498 = vst [vmem:[%s2 + $0x10] sm:$0xff] %v490
  %499 = vst [vmem:[%s2 + $0x18] sm:$0xff] %v491
  %500 = vst [vmem:[%s2 + $0x20] sm:$0xff] %v492
  %501 = vst [vmem:[%s2 + $0x28] sm:$0xff] %v493
  %502 = vst [vmem:[%s2 + $0x30] sm:$0xff] %v494
  %503 = vst [vmem:[%s2 + $0x38] sm:$0xff] %v495
  // Predicated region
  $region6: #{gmm_log_likelihood.1} parent=0 // pred_check
    _
  $region7: #{gmm_log_likelihood.1} parent=0 // pred_check_branch
    %505 = sbr.rel (0) target = $region9
  $region8: #{gmm_log_likelihood.1} parent=0 // pred_region
    _
  $region9: #{gmm_log_likelihood.1} parent=0 // pred_fallthru
    _
  // Predicated region
  $region10: #{gmm_log_likelihood.1} parent=0 // pred_check
    _
  $region11: #{gmm_log_likelihood.1} parent=0 // pred_check_branch
    %507 = sbr.rel (0) target = $region13
  $region12: #{gmm_log_likelihood.1} parent=0 // pred_region
    _
  $region13: #{gmm_log_likelihood.1} parent=0 // pred_fallthru
    _

</llo_original>
